<compile_context>
chip_gen: v5e
topology: v5e:2x2
jax: 0.10.0
libtpu: 0.0.40
codegen_flags: <defaults>
</compile_context>

<pallas_src>
import functools

import jax
import jax.numpy as jnp
from jax.experimental import pallas as pl
from jax.experimental.pallas import tpu as pltpu


def _round_up(x: int, m: int) -> int:
    return ((x + m - 1) // m) * m


def _lane(n: int) -> int:           # lane (last-dim) padding to 128
    return _round_up(max(n, 1), 128)


def _sub(n: int) -> int:            # sublane (second-to-last dim) padding to 8
    return _round_up(max(n, 1), 8)


def _tpu_vmem_and_cores():
    """Best-effort query of per-core VMEM bytes and TensorCores per chip."""
    vmem_bytes = 64 * 1024 * 1024   # safe minimum across v5e/v6e/v7x
    num_cores = 1
    try:
        info = pltpu.get_tpu_info()
        for name in ("vmem_capacity_bytes", "vmem_bytes", "vmem_size_bytes"):
            v = getattr(info, name, None)
            if isinstance(v, int) and v > 0:
                vmem_bytes = v
                break
        for name in ("num_tensorcores", "tensorcore_count", "num_cores",
                     "cores_per_chip"):
            c = getattr(info, name, None)
            if isinstance(c, int) and c > 0:
                num_cores = c
                break
    except Exception:
        pass
    return vmem_bytes, num_cores


def _mlp_baseline1_kernel(x1_ref, x2_ref, w1_ref, b1_ref, w2_ref, b2_ref, o_ref,
                          *, aggr: str, d_in: int):
    x1 = x1_ref[...]
    x2 = x2_ref[...]
    # `aggr` is a Python string -> branch resolved at trace time (no runtime cond).
    if aggr == "max":
        h = jnp.dot(jnp.maximum(x1, x2), w1_ref[...],
                    preferred_element_type=jnp.float32)
    elif aggr == "sum":
        h = jnp.dot(x1 + x2, w1_ref[...], preferred_element_type=jnp.float32)
    elif aggr == "min":
        h = jnp.dot(jnp.minimum(x1, x2), w1_ref[...],
                    preferred_element_type=jnp.float32)
    elif aggr == "combine":
        if d_in % 8 == 0:
            # Three accumulated matmuls against static row-slices of W1:
            # avoids the cross-lane concat relayout and the (tb, 3*D) temp.
            h = (jnp.dot(x1 + x2, w1_ref[0:d_in, :],
                         preferred_element_type=jnp.float32)
                 + jnp.dot(jnp.maximum(x1, x2), w1_ref[d_in:2 * d_in, :],
                           preferred_element_type=jnp.float32)
                 + jnp.dot(jnp.minimum(x1, x2), w1_ref[2 * d_in:3 * d_in, :],
                           preferred_element_type=jnp.float32))
        else:
            embd = jnp.concatenate(
                [x1 + x2, jnp.maximum(x1, x2), jnp.minimum(x1, x2)], axis=-1)
            h = jnp.dot(embd, w1_ref[...], preferred_element_type=jnp.float32)
    else:
        raise ValueError(f"unknown aggr: {aggr}")

    h = jnp.maximum(h + b1_ref[...], 0.0)                       # Linear1 + ReLU
    out = jnp.dot(h, w2_ref[...], preferred_element_type=jnp.float32) + b2_ref[...]
    o_ref[...] = out.astype(o_ref.dtype)


def _choose_batch_tile(B: int, d_in: int, d_emb: int, h: int, d_out: int,
                       aggr: str, *, vmem_budget_bytes: int, num_cores: int,
                       max_tb: int) -> int:
    """Largest batch tile that fits the (lane-padding-aware) VMEM budget."""
    # Resident weights/biases, padded to (8, 128) VMEM tiles, copied once.
    weight_bytes = 4 * (_sub(d_emb) * _lane(h) + 8 * _lane(h)
                        + _sub(h) * _lane(d_out) + 8 * _lane(d_out))
    avail = max(vmem_budget_bytes - weight_bytes, 0)

    # Per-row VMEM cost with 128-lane padding: double-buffered x1/x2 input
    # blocks + double-buffered output block + live f32 intermediates inside
    # one grid step (loaded x1/x2, aggregate(s), hidden, out).
    n_aggr = 3 if aggr == "combine" else 1
    per_row = 4 * (2 * 2 * _lane(d_in)        # x1/x2 blocks (double buffered)
                   + 2 * _lane(d_out)         # output block (double buffered)
                   + 2 * _lane(d_in)          # loaded x1/x2 values
                   + n_aggr * _lane(d_in)     # aggregate value(s)
                   + _lane(h)                 # hidden activations
                   + _lane(d_out))            # output values
    tb = avail // max(per_row, 1)
    tb = min(tb, max_tb, _round_up(B, 8))
    # MXU-friendly rounding: multiple of 256 when large, else multiple of 8.
    if tb >= 1024:
        tb = (tb // 256) * 256
    else:
        tb = (tb // 8) * 8
    tb = max(tb, 8)

    # Megacore: only split the batch across grid steps when there are >=2
    # TensorCores to feed; make the grid even so both cores stay balanced.
    if num_cores >= 2 and B >= 16:
        grid = pl.cdiv(B, tb)
        grid_target = _round_up(max(grid, 2), 2)
        tb = max(8, _round_up(pl.cdiv(B, grid_target), 8))
    return tb


def mlp_baseline1(x1, x2, w1, b1, w2, b2, *, aggr: str = "max",
                  tb: int | None = None, vmem_limit_bytes: int | None = None):
    """Forward of MLPBaseline1 with mlp = Linear -> ReLU -> Linear."""
    B, D = x1.shape
    assert x2.shape == (B, D)
    D_emb, H = w1.shape
    O = w2.shape[1]
    assert b1.shape == (1, H) and w2.shape == (H, O) and b2.shape == (1, O)
    assert D_emb == (3 * D if aggr == "combine" else D)

    phys_vmem, num_cores = _tpu_vmem_and_cores()
    if vmem_limit_bytes is None:
        # ~96 MiB on 128-MiB parts (v5e/v6e), ~48 MiB on 64-MiB parts (v7x).
        vmem_limit_bytes = min(96 * 1024 * 1024, (phys_vmem * 3) // 4)
    max_tb = 8192 if phys_vmem >= 100 * 1024 * 1024 else 4096
    budget = max(vmem_limit_bytes - (2 << 20), 4 << 20)   # headroom for scratch

    if tb is None:
        tb = _choose_batch_tile(B, D, D_emb, H, O, aggr,
                                vmem_budget_bytes=budget,
                                num_cores=num_cores, max_tb=max_tb)
    # Final sanitation: one full-array block if it spans B (no ragged block at
    # all), otherwise a multiple of 8 -> Pallas masks the ragged last block.
    if tb >= B:
        tb = B
    else:
        tb = max(8, (tb // 8) * 8)

    grid = pl.cdiv(B, tb)
    kernel = functools.partial(_mlp_baseline1_kernel, aggr=aggr, d_in=D)

    # Weights/biases: full arrays held resident in VMEM (copied once, no
    # per-grid-step DMA).
    resident = pl.BlockSpec(memory_space=pltpu.MemorySpace.VMEM)

    cost = pl.CostEstimate(
        flops=2 * B * (D_emb * H + H * O),
        transcendentals=0,
        bytes_accessed=4 * (B * (2 * D + O) + D_emb * H + H + H * O + O),
    )

    out = pl.pallas_call(
        kernel,
        out_shape=jax.ShapeDtypeStruct((B, O), x1.dtype),
        grid=(grid,),
        in_specs=[
            pl.BlockSpec((tb, D), lambda i: (i, 0)),   # input1 batch tile
            pl.BlockSpec((tb, D), lambda i: (i, 0)),   # input2 batch tile
            resident,                                  # W1
            resident,                                  # b1
            resident,                                  # W2
            resident,                                  # b2
        ],
        out_specs=pl.BlockSpec((tb, O), lambda i: (i, 0)),
        compiler_params=pltpu.CompilerParams(
            dimension_semantics=("parallel",),
            vmem_limit_bytes=int(vmem_limit_bytes),
        ),
        cost_estimate=cost,
    )(x1, x2, w1, b1, w2, b2)
    return out


def _ref_forward(x1, x2, w1, b1, w2, b2, aggr):
    if aggr == "max":
        embd = jnp.maximum(x1, x2)
    elif aggr == "sum":
        embd = x1 + x2
    elif aggr == "min":
        embd = jnp.minimum(x1, x2)
    else:  # combine
        embd = jnp.concatenate(
            [x1 + x2, jnp.maximum(x1, x2), jnp.minimum(x1, x2)], axis=-1)
    return jnp.maximum(embd @ w1 + b1, 0.0) @ w2 + b2


if __name__ == "__main__":
    key = jax.random.PRNGKey(0)

    # Small shapes consistent with the module.  Cases exercise:
    #  (a) ragged batch (B=20 not a multiple of 8), auto tile, single block;
    #  (b) 'combine' split-matmul path with a forced multi-step ragged grid;
    #  (c) tiny batch (< 8 rows, block == full array dims).
    configs = [
        (20, 32, 64, 16, "max", None),
        (40, 32, 64, 16, "combine", 16),
        (4, 32, 64, 16, "sum", None),
    ]

    for (B, D_IN, HIDDEN, D_OUT, AGGR, TB) in configs:
        k1, k2, kw1, kb1, kw2, kb2, key = jax.random.split(key, 7)
        D_EMB = 3 * D_IN if AGGR == "combine" else D_IN

        x1 = jax.random.normal(k1, (B, D_IN), dtype=jnp.float32)
        x2 = jax.random.normal(k2, (B, D_IN), dtype=jnp.float32)
        # init_weights(): normal(std=0.01) for Linear weights and biases.
        # Stored as [in, out] (transpose of PyTorch's [out, in]).
        w1 = 0.01 * jax.random.normal(kw1, (D_EMB, HIDDEN), dtype=jnp.float32)
        b1 = 0.01 * jax.random.normal(kb1, (1, HIDDEN), dtype=jnp.float32)
        w2 = 0.01 * jax.random.normal(kw2, (HIDDEN, D_OUT), dtype=jnp.float32)
        b2 = 0.01 * jax.random.normal(kb2, (1, D_OUT), dtype=jnp.float32)

        out = mlp_baseline1(x1, x2, w1, b1, w2, b2, aggr=AGGR, tb=TB)
        out = jax.block_until_ready(out)

        ref = _ref_forward(x1, x2, w1, b1, w2, b2, AGGR)
        assert out.shape == (B, D_OUT)
        assert jnp.allclose(out, ref, atol=1e-5, rtol=1e-5), \
            f"mismatch vs reference (aggr={AGGR}, B={B})"

    print("KERNEL_OK")
</pallas_src>

<mosaic_0001>
module attributes {stable_mosaic.version = 11 : i64} {
  func.func @_mlp_baseline1_kernel(%arg0: i32, %arg1: memref<20x32xf32, #tpu.memory_space<vmem>>, %arg2: memref<20x32xf32, #tpu.memory_space<vmem>>, %arg3: memref<32x64xf32, #tpu.memory_space<vmem>>, %arg4: memref<1x64xf32, #tpu.memory_space<vmem>>, %arg5: memref<64x16xf32, #tpu.memory_space<vmem>>, %arg6: memref<1x16xf32, #tpu.memory_space<vmem>>, %arg7: memref<20x16xf32, #tpu.memory_space<vmem>>) attributes {dimension_semantics = [#tpu.dimension_semantics<parallel>], iteration_bounds = array<i64: 1>, scalar_prefetch = 0 : i64, scratch_operands = 0 : i64, tpu.core_type = #tpu.core_type<tc>, window_params = [{transform_indices = @transform_0, window_bounds = array<i64: 20, 32>}, {transform_indices = @transform_1, window_bounds = array<i64: 20, 32>}, {pipeline_mode = #tpu.pipeline_mode<synchronous>, transform_indices = @transform_2, window_bounds = array<i64: 32, 64>}, {pipeline_mode = #tpu.pipeline_mode<synchronous>, transform_indices = @transform_3, window_bounds = array<i64: 1, 64>}, {pipeline_mode = #tpu.pipeline_mode<synchronous>, transform_indices = @transform_4, window_bounds = array<i64: 64, 16>}, {pipeline_mode = #tpu.pipeline_mode<synchronous>, transform_indices = @transform_5, window_bounds = array<i64: 1, 16>}, {transform_indices = @transform_6, window_bounds = array<i64: 20, 16>}]} {
    %c0 = arith.constant 0 : index
    %c0_0 = arith.constant 0 : index
    %0 = vector.load %arg1[%c0, %c0_0] : memref<20x32xf32, #tpu.memory_space<vmem>>, vector<20x32xf32>
    %c0_1 = arith.constant 0 : index
    %c0_2 = arith.constant 0 : index
    %1 = vector.load %arg2[%c0_1, %c0_2] : memref<20x32xf32, #tpu.memory_space<vmem>>, vector<20x32xf32>
    %2 = arith.maximumf %0, %1 : vector<20x32xf32>
    %c0_3 = arith.constant 0 : index
    %c0_4 = arith.constant 0 : index
    %3 = vector.load %arg3[%c0_3, %c0_4] : memref<32x64xf32, #tpu.memory_space<vmem>>, vector<32x64xf32>
    %cst = arith.constant dense<0.000000e+00> : vector<20x64xf32>
    %4 = tpu.matmul %2, %3, %cst {dimension_numbers = #tpu.dot_dimension_numbers<[1], [0], [0], [1], [0, 0, 1, 1], [], []>} : vector<20x32xf32>, vector<32x64xf32>, vector<20x64xf32> -> vector<20x64xf32>
    %c0_5 = arith.constant 0 : index
    %c0_6 = arith.constant 0 : index
    %5 = vector.load %arg4[%c0_5, %c0_6] : memref<1x64xf32, #tpu.memory_space<vmem>>, vector<1x64xf32>
    %6 = vector.broadcast %5 : vector<1x64xf32> to vector<20x64xf32>
    %7 = arith.addf %4, %6 : vector<20x64xf32>
    %cst_7 = arith.constant 0.000000e+00 : f32
    %8 = vector.broadcast %cst_7 : f32 to vector<20x64xf32>
    %9 = arith.maximumf %7, %8 : vector<20x64xf32>
    %c0_8 = arith.constant 0 : index
    %c0_9 = arith.constant 0 : index
    %10 = vector.load %arg5[%c0_8, %c0_9] : memref<64x16xf32, #tpu.memory_space<vmem>>, vector<64x16xf32>
    %cst_10 = arith.constant dense<0.000000e+00> : vector<20x16xf32>
    %11 = tpu.matmul %9, %10, %cst_10 {dimension_numbers = #tpu.dot_dimension_numbers<[1], [0], [0], [1], [0, 0, 1, 1], [], []>} : vector<20x64xf32>, vector<64x16xf32>, vector<20x16xf32> -> vector<20x16xf32>
    %c0_11 = arith.constant 0 : index
    %c0_12 = arith.constant 0 : index
    %12 = vector.load %arg6[%c0_11, %c0_12] : memref<1x16xf32, #tpu.memory_space<vmem>>, vector<1x16xf32>
    %13 = vector.broadcast %12 : vector<1x16xf32> to vector<20x16xf32>
    %14 = arith.addf %11, %13 : vector<20x16xf32>
    %c0_13 = arith.constant 0 : index
    %c0_14 = arith.constant 0 : index
    %15 = vector.load %arg7[%c0_13, %c0_14] : memref<20x16xf32, #tpu.memory_space<vmem>>, vector<20x16xf32>
    tpu.vector_store %arg7[%c0_13, %c0_14], %14 {strides = array<i32>} : memref<20x16xf32, #tpu.memory_space<vmem>>, vector<20x16xf32>,
    return
  }
  func.func @transform_0(%arg0: i32) -> (i32, i32) {
    %c0_i32 = arith.constant 0 : i32
    %c0_i32_0 = arith.constant 0 : i32
    return %arg0, %c0_i32 : i32, i32
  }
  func.func @transform_1(%arg0: i32) -> (i32, i32) {
    %c0_i32 = arith.constant 0 : i32
    %c0_i32_0 = arith.constant 0 : i32
    return %arg0, %c0_i32 : i32, i32
  }
  func.func @transform_2(%arg0: i32) -> (i32, i32) {
    %c0_i32 = arith.constant 0 : i32
    %c0_i32_0 = arith.constant 0 : i32
    %c0_i32_1 = arith.constant 0 : i32
    return %c0_i32, %c0_i32_0 : i32, i32
  }
  func.func @transform_3(%arg0: i32) -> (i32, i32) {
    %c0_i32 = arith.constant 0 : i32
    %c0_i32_0 = arith.constant 0 : i32
    %c0_i32_1 = arith.constant 0 : i32
    return %c0_i32, %c0_i32_0 : i32, i32
  }
  func.func @transform_4(%arg0: i32) -> (i32, i32) {
    %c0_i32 = arith.constant 0 : i32
    %c0_i32_0 = arith.constant 0 : i32
    %c0_i32_1 = arith.constant 0 : i32
    return %c0_i32, %c0_i32_0 : i32, i32
  }
  func.func @transform_5(%arg0: i32) -> (i32, i32) {
    %c0_i32 = arith.constant 0 : i32
    %c0_i32_0 = arith.constant 0 : i32
    %c0_i32_1 = arith.constant 0 : i32
    return %c0_i32, %c0_i32_0 : i32, i32
  }
  func.func @transform_6(%arg0: i32) -> (i32, i32) {
    %c0_i32 = arith.constant 0 : i32
    %c0_i32_0 = arith.constant 0 : i32
    return %arg0, %c0_i32 : i32, i32
  }
}

</mosaic_0001>

<llo_original>
// kernel: tpu_custom_call.1
$region0: #{tpu_custom_call.1}
  #allocation0 [shape = 'u32[]', space=smem, size = 0x4, offset = 0x4, fixed_abs, tag = 'smem constant byte address 0x4 - core index']
  #allocation1 [shape = 'u32[72,128]{1,0:T(1,128)}', space=vmem, size = 0x9000, scoped, tag = 'internal scratch']
  %s0 = inlined_call_operand.vmem [shape: f32[20,32], index: 0, kind: input, shape index: {}]
  %s1 = inlined_call_operand.vmem [shape: f32[20,32], index: 1, kind: input, shape index: {}]
  %s2 = inlined_call_operand.vmem [shape: f32[32,64], index: 2, kind: input, shape index: {}]
  %s3 = inlined_call_operand.vmem [shape: f32[1,64], index: 3, kind: input, shape index: {}]
  %s4 = inlined_call_operand.vmem [shape: f32[64,16], index: 4, kind: input, shape index: {}]
  %s5 = inlined_call_operand.vmem [shape: f32[1,16], index: 5, kind: input, shape index: {}]
  %s6 = inlined_call_operand.vmem [shape: f32[20,16], index: 6, kind: output, shape index: {}]
  %s7 = sld [smem:[#allocation0]]
  $region34: #{tpu_custom_call.1} parent=0
    _
  %s9 = ssub.s32 1, %s7
  %s10 = scalar_select 0, %s9, %s7
  // Predicated region
  $region2: #{tpu_custom_call.1} parent=0 // pred_check
    _
  $region3: #{tpu_custom_call.1} parent=0 // pred_check_branch
    %12 = sbr.rel (0) target = $region5
  $region4: #{tpu_custom_call.1} parent=0 // pred_region
    _
  $region5: #{tpu_custom_call.1} parent=0 // pred_fallthru
    _
  // Predicated region
  $region6: #{tpu_custom_call.1} parent=0 // pred_check
    _
  $region7: #{tpu_custom_call.1} parent=0 // pred_check_branch
    %14 = sbr.rel (0) target = $region9
  $region8: #{tpu_custom_call.1} parent=0 // pred_region
    _
  $region9: #{tpu_custom_call.1} parent=0 // pred_fallthru
    _
  // Predicated region
  $region10: #{tpu_custom_call.1} parent=0 // pred_check
    _
  $region11: #{tpu_custom_call.1} parent=0 // pred_check_branch
    %16 = sbr.rel (0) target = $region13
  $region12: #{tpu_custom_call.1} parent=0 // pred_region
    _
  $region13: #{tpu_custom_call.1} parent=0 // pred_fallthru
    _
  // Predicated region
  $region14: #{tpu_custom_call.1} parent=0 // pred_check
    _
  $region15: #{tpu_custom_call.1} parent=0 // pred_check_branch
    %18 = sbr.rel (0) target = $region17
  $region16: #{tpu_custom_call.1} parent=0 // pred_region
    _
  $region17: #{tpu_custom_call.1} parent=0 // pred_fallthru
    _
  // Predicated region
  $region18: #{tpu_custom_call.1} parent=0 // pred_check
    _
  $region19: #{tpu_custom_call.1} parent=0 // pred_check_branch
    %20 = sbr.rel (0) target = $region21
  $region20: #{tpu_custom_call.1} parent=0 // pred_region
    _
  $region21: #{tpu_custom_call.1} parent=0 // pred_fallthru
    _
  // Predicated region
  $region22: #{tpu_custom_call.1} parent=0 // pred_check
    _
  $region23: #{tpu_custom_call.1} parent=0 // pred_check_branch
    %22 = sbr.rel (0) target = $region25
  $region24: #{tpu_custom_call.1} parent=0 // pred_region
    _
  $region25: #{tpu_custom_call.1} parent=0 // pred_fallthru
    _
  %v23 = vld [vmem:[%s0] sm:$0xff]
  %v24 = vld [vmem:[%s0 + $0x8] sm:$0xff]
  %v25 = vld [vmem:[%s0 + $0x10] sm:$0xf]
  %v26 = vld [vmem:[%s1] sm:$0xff]
  %v27 = vld [vmem:[%s1 + $0x8] sm:$0xff]
  %v28 = vld [vmem:[%s1 + $0x10] sm:$0xf]
  %v29 = vmax.f32 %v23, %v26
  %v30 = vmax.f32 %v24, %v27
  %v31 = vmax.f32 %v25, %v28
  %v32 = vld [vmem:[%s2] sm:$0xff]
  %v33 = vld [vmem:[%s2 + $0x8] sm:$0xff]
  %v34 = vld [vmem:[%s2 + $0x10] sm:$0xff]
  %v35 = vld [vmem:[%s2 + $0x18] sm:$0xff]
  %v36 = vld [vmem:[%s3] sm:$0x1]
  %v38 = vperm.slane %v36, 0
  %vm40 = vcmask 261120
  %v42 = vsel %vm40, %v29, 0
  %v45 = vsel %vm40, %v30, 0
  %v48 = vsel %vm40, %v31, 0
  %50 = vmatpush.msra.mxu0 0.0
  %51 = vmatpush.msra.mxu0 0.0
  %52 = vmatpush.msra.mxu0 0.0
  %53 = vmatpush.msra.mxu0 0.0
  %54 = vmatpush.msra.mxu0 0.0
  %55 = vmatpush.msra.mxu0 0.0
  %56 = vmatpush.msra.mxu0 0.0
  %57 = vmatpush.msra.mxu0 0.0
  %58 = vmatpush.msra.mxu0 0.0
  %59 = vmatpush.msra.mxu0 0.0
  %60 = vmatpush.msra.mxu0 0.0
  %61 = vmatpush.msra.mxu0 0.0
  %62 = vmatpush.msra.mxu0 %v35
  %63 = vmatpush.msra.mxu0 %v34
  %64 = vmatpush.msra.mxu0 %v33
  %65 = vmatpush.msra.mxu0 %v32
  %66 = vmatmul.f32.gmra.mxu0 %v42
  %v67 = vpop.f32.mrf.mxu0
  %v68 = vadd.f32 %v38, %v67
  %69 = vmatmul.f32.gmra.mxu0 %v45
  %v70 = vpop.f32.mrf.mxu0
  %v71 = vadd.f32 %v38, %v70
  %72 = vmatmul.f32.gmra.mxu0 %v48
  %v73 = vpop.f32.mrf.mxu0
  %v74 = vadd.f32 %v38, %v73
  %75 = vdwg.mxu0
  %v76 = vmax.f32 %v68, 0.0
  %v77 = vmax.f32 %v71, 0.0
  %v78 = vmax.f32 %v74, 0.0
  %v79 = vld [vmem:[%s4] sm:$0xff]
  %v80 = vld [vmem:[%s4 + $0x8] sm:$0xff]
  %v81 = vld [vmem:[%s4 + $0x10] sm:$0xff]
  %v82 = vld [vmem:[%s4 + $0x18] sm:$0xff]
  %v83 = vld [vmem:[%s4 + $0x20] sm:$0xff]
  %v84 = vld [vmem:[%s4 + $0x28] sm:$0xff]
  %v85 = vld [vmem:[%s4 + $0x30] sm:$0xff]
  %v86 = vld [vmem:[%s4 + $0x38] sm:$0xff]
  %v87 = vld [vmem:[%s5] sm:$0x1]
  %v89 = vperm.slane %v87, 0
  %vm91 = vcmask 523264
  %v93 = vsel %vm91, %v76, 0
  %v96 = vsel %vm91, %v77, 0
  %v99 = vsel %vm91, %v78, 0
  %101 = vmatpush.msra.mxu0 0.0
  %102 = vmatpush.msra.mxu0 0.0
  %103 = vmatpush.msra.mxu0 0.0
  %104 = vmatpush.msra.mxu0 0.0
  %105 = vmatpush.msra.mxu0 0.0
  %106 = vmatpush.msra.mxu0 0.0
  %107 = vmatpush.msra.mxu0 0.0
  %108 = vmatpush.msra.mxu0 0.0
  %109 = vmatpush.msra.mxu0 %v86
  %110 = vmatpush.msra.mxu0 %v85
  %111 = vmatpush.msra.mxu0 %v84
  %112 = vmatpush.msra.mxu0 %v83
  %113 = vmatpush.msra.mxu0 %v82
  %114 = vmatpush.msra.mxu0 %v81
  %115 = vmatpush.msra.mxu0 %v80
  %116 = vmatpush.msra.mxu0 %v79
  %117 = vmatmul.f32.gmra.mxu0 %v93
  %v118 = vpop.f32.mrf.mxu0
  %v119 = vadd.f32 %v89, %v118
  %120 = vmatmul.f32.gmra.mxu0 %v96
  %v121 = vpop.f32.mrf.mxu0
  %v122 = vadd.f32 %v89, %v121
  %123 = vmatmul.f32.gmra.mxu0 %v99
  %v124 = vpop.f32.mrf.mxu0
  %v125 = vadd.f32 %v89, %v124
  %126 = vdwg.mxu0
  %vm127 = vcmask 130048
  %128 = vst.msk [vmem:[%s6] sm:$0xff] %vm127, %v119
  %129 = vst.msk [vmem:[%s6 + $0x8] sm:$0xff] %vm127, %v122
  %vm130 = vcmask 125952
  %131 = vst.msk [vmem:[%s6 + $0x10] sm:$0xf] %vm130, %v125
  // Predicated region
  $region26: #{tpu_custom_call.1} parent=0 // pred_check
    _
  $region27: #{tpu_custom_call.1} parent=0 // pred_check_branch
    %133 = sbr.rel (0) target = $region29
  $region28: #{tpu_custom_call.1} parent=0 // pred_region
    _
  $region29: #{tpu_custom_call.1} parent=0 // pred_fallthru
    _
  // Predicated region
  $region30: #{tpu_custom_call.1} parent=0 // pred_check
    _
  $region31: #{tpu_custom_call.1} parent=0 // pred_check_branch
    %135 = sbr.rel (0) target = $region33
  $region32: #{tpu_custom_call.1} parent=0 // pred_region
    _
  $region33: #{tpu_custom_call.1} parent=0 // pred_fallthru
    _

</llo_original>
